<compile_context>
chip_gen: v5e
topology: v5e:2x2
jax: 0.10.0
libtpu: 0.0.40
codegen_flags: <defaults>
</compile_context>

<pallas_src>
import jax
import jax.numpy as jnp
from jax.experimental import pallas as pl
from jax.experimental.pallas import tpu as pltpu

LATENT_DIM = 32
IN_DIM = 28 * 28          # 784
HID_DIM = 128
PAD_DIM = 896             # 784 rounded up to a multiple of 128 (lane-dense)
TB_MAX = 512              # max batch-tile rows (sized for v7x's 64 MiB VMEM)


def _round_up(x, m):
    return ((x + m - 1) // m) * m


def _autoencoder_kernel(x_ref,
                        w1_ref, b1_ref,
                        w23_ref, b23_ref,
                        w4_ref, b4_ref,
                        out_ref):
    """One batch tile of the AutoEncoder forward.

    x_ref:   (TB, 896) bf16   (784 real cols + 112 zero-padded)
    w1_ref:  (896, 128) bf16  b1_ref:  (1, 128) f32
    w23_ref: (128, 128) bf16  b23_ref: (1, 128) f32   (folded w2@w3 / b2@w3+b3)
    w4_ref:  (128, 896) bf16  b4_ref:  (1, 896) f32
    out_ref: (TB, 896) f32
    """
    x = x_ref[...]

    # encoder: Linear(784, 128) + ReLU   (bf16 MXU operands, f32 accumulate)
    h1 = jnp.dot(x, w1_ref[...], preferred_element_type=jnp.float32) + b1_ref[...]
    h1 = jnp.maximum(h1, 0.0)

    # encoder Linear(128, 32) + decoder Linear(32, 128) folded into one 128x128
    # matmul (no nonlinearity in between), then ReLU.
    h2 = jnp.dot(h1.astype(jnp.bfloat16), w23_ref[...],
                 preferred_element_type=jnp.float32) + b23_ref[...]
    h2 = jnp.maximum(h2, 0.0)

    # decoder: Linear(128, 784) + Sigmoid
    y = jnp.dot(h2.astype(jnp.bfloat16), w4_ref[...],
                preferred_element_type=jnp.float32) + b4_ref[...]
    e = jnp.exp(-y)                                   # EUP
    out_ref[...] = pl.reciprocal(1.0 + e, approx=True)  # EUP, off the VALU


def autoencoder_forward(x_nchw, params):
    """x_nchw: (B, 1, 28, 28) float32 -> (B, 1, 28, 28) float32."""
    B = x_nchw.shape[0]
    (w1, b1, w2, b2, w3, b3, w4, b4) = params

    # --- wrapper-side param prep (layout + fold, cheap & done by XLA) ---
    w23 = w2 @ w3                       # (128, 128) f32
    b23 = b2 @ w3 + b3                  # (1, 128)  f32
    w1p = jnp.pad(w1, ((0, PAD_DIM - IN_DIM), (0, 0)))        # (896, 128)
    w4p = jnp.pad(w4, ((0, 0), (0, PAD_DIM - IN_DIM)))        # (128, 896)
    b4p = jnp.pad(b4, ((0, 0), (0, PAD_DIM - IN_DIM)))        # (1, 896)

    w1_bf = w1p.astype(jnp.bfloat16)
    w23_bf = w23.astype(jnp.bfloat16)
    w4_bf = w4p.astype(jnp.bfloat16)

    # --- activation prep: flatten, pad lanes to 896, pad batch to tile, bf16 ---
    x_flat = x_nchw.reshape(B, IN_DIM)                        # nn.Flatten
    tb = min(TB_MAX, _round_up(B, 8))                         # batch tile (mult of 8)
    Bp = _round_up(B, tb)
    x_pad = jnp.pad(x_flat, ((0, Bp - B), (0, PAD_DIM - IN_DIM)))
    x_bf = x_pad.astype(jnp.bfloat16)

    grid = (Bp // tb,)

    # x / out tiles move per grid step; weights & biases stay resident (block 0,0).
    x_spec = pl.BlockSpec((tb, PAD_DIM), lambda i: (i, 0))
    out_spec = pl.BlockSpec((tb, PAD_DIM), lambda i: (i, 0))

    def resident(shape):
        return pl.BlockSpec(shape, lambda i: (0, 0))

    in_specs = [
        x_spec,
        resident((PAD_DIM, HID_DIM)), resident((1, HID_DIM)),
        resident((HID_DIM, HID_DIM)), resident((1, HID_DIM)),
        resident((HID_DIM, PAD_DIM)), resident((1, PAD_DIM)),
    ]

    # Explicit VMEM budget: double-buffered x/out tiles + (conservatively
    # double-buffered) weights + headroom.
    bytes_x = tb * PAD_DIM * 2
    bytes_out = tb * PAD_DIM * 4
    bytes_w = (PAD_DIM * HID_DIM + HID_DIM * HID_DIM + HID_DIM * PAD_DIM) * 2 \
              + (HID_DIM + HID_DIM + PAD_DIM) * 4
    vmem_limit = int(2 * bytes_x + 2 * bytes_out + 2 * bytes_w + (4 << 20))

    out_pad = pl.pallas_call(
        _autoencoder_kernel,
        out_shape=jax.ShapeDtypeStruct((Bp, PAD_DIM), jnp.float32),
        grid_spec=pltpu.PrefetchScalarGridSpec(
            num_scalar_prefetch=0,
            grid=grid,
            in_specs=in_specs,
            out_specs=out_spec,
        ),
        compiler_params=pltpu.CompilerParams(
            dimension_semantics=("parallel",),
            vmem_limit_bytes=vmem_limit,
        ),
    )(x_bf, w1_bf, b1, w23_bf, b23, w4_bf, b4p)

    # Drop batch/lane padding; nn.Unflatten(1, (1, 28, 28)).
    return out_pad[:B, :IN_DIM].reshape(B, 1, 28, 28)


def init_params(key):
    """PyTorch-style uniform(+/- 1/sqrt(fan_in)) init.

    Weights stored as (in_features, out_features); biases as (1, out_features).
    """
    def linear(key, fan_in, fan_out):
        kw, kb = jax.random.split(key)
        bound = 1.0 / jnp.sqrt(fan_in)
        w = jax.random.uniform(kw, (fan_in, fan_out), jnp.float32, -bound, bound)
        b = jax.random.uniform(kb, (1, fan_out), jnp.float32, -bound, bound)
        return w, b

    k1, k2, k3, k4 = jax.random.split(key, 4)
    w1, b1 = linear(k1, IN_DIM, HID_DIM)       # encoder Linear(784, 128)
    w2, b2 = linear(k2, HID_DIM, LATENT_DIM)   # encoder Linear(128, 32)
    w3, b3 = linear(k3, LATENT_DIM, HID_DIM)   # decoder Linear(32, 128)
    w4, b4 = linear(k4, HID_DIM, IN_DIM)       # decoder Linear(128, 784)
    return (w1, b1, w2, b2, w3, b3, w4, b4)


def reference_forward(x_nchw, params):
    """Pure-JAX f32 reference matching the PyTorch module exactly."""
    (w1, b1, w2, b2, w3, b3, w4, b4) = params
    B = x_nchw.shape[0]
    x = x_nchw.reshape(B, IN_DIM)
    h1 = jnp.maximum(x @ w1 + b1, 0.0)
    z = h1 @ w2 + b2
    h2 = jnp.maximum(z @ w3 + b3, 0.0)
    y = h2 @ w4 + b4
    return jax.nn.sigmoid(y).reshape(B, 1, 28, 28)


if __name__ == "__main__":
    key = jax.random.PRNGKey(0)
    k_params, k_x = jax.random.split(key)

    params = init_params(k_params)
    x = jax.random.uniform(k_x, (4, 1, 28, 28), jnp.float32)  # MNIST-like batch

    out = autoencoder_forward(x, params)
    out = jax.block_until_ready(out)

    ref = reference_forward(x, params)
    assert out.shape == (4, 1, 28, 28)
    # bf16 MXU operands + approx reciprocal -> loosened tolerance vs f32 reference.
    max_err = float(jnp.max(jnp.abs(out - ref)))
    assert max_err < 2e-2, f"mismatch vs JAX reference (max abs err {max_err})"

    print("KERNEL_OK")
</pallas_src>

<mosaic_0001>
module attributes {stable_mosaic.version = 11 : i64} {
  func.func @_autoencoder_kernel(%arg0: i32, %arg1: memref<8x896xbf16, #tpu.memory_space<vmem>>, %arg2: memref<896x128xbf16, #tpu.memory_space<vmem>>, %arg3: memref<1x128xf32, #tpu.memory_space<vmem>>, %arg4: memref<128x128xbf16, #tpu.memory_space<vmem>>, %arg5: memref<1x128xf32, #tpu.memory_space<vmem>>, %arg6: memref<128x896xbf16, #tpu.memory_space<vmem>>, %arg7: memref<1x896xf32, #tpu.memory_space<vmem>>, %arg8: memref<8x896xf32, #tpu.memory_space<vmem>>) attributes {dimension_semantics = [#tpu.dimension_semantics<parallel>], iteration_bounds = array<i64: 1>, scalar_prefetch = 0 : i64, scratch_operands = 0 : i64, tpu.core_type = #tpu.core_type<tc>, window_params = [{transform_indices = @transform_0, window_bounds = array<i64: 8, 896>}, {pipeline_mode = #tpu.pipeline_mode<synchronous>, transform_indices = @transform_1, window_bounds = array<i64: 896, 128>}, {pipeline_mode = #tpu.pipeline_mode<synchronous>, transform_indices = @transform_2, window_bounds = array<i64: 1, 128>}, {pipeline_mode = #tpu.pipeline_mode<synchronous>, transform_indices = @transform_3, window_bounds = array<i64: 128, 128>}, {pipeline_mode = #tpu.pipeline_mode<synchronous>, transform_indices = @transform_4, window_bounds = array<i64: 1, 128>}, {pipeline_mode = #tpu.pipeline_mode<synchronous>, transform_indices = @transform_5, window_bounds = array<i64: 128, 896>}, {pipeline_mode = #tpu.pipeline_mode<synchronous>, transform_indices = @transform_6, window_bounds = array<i64: 1, 896>}, {transform_indices = @transform_7, window_bounds = array<i64: 8, 896>}]} {
    %c0 = arith.constant 0 : index
    %c0_0 = arith.constant 0 : index
    %0 = vector.load %arg1[%c0, %c0_0] : memref<8x896xbf16, #tpu.memory_space<vmem>>, vector<8x896xbf16>
    %c0_1 = arith.constant 0 : index
    %c0_2 = arith.constant 0 : index
    %1 = vector.load %arg2[%c0_1, %c0_2] : memref<896x128xbf16, #tpu.memory_space<vmem>>, vector<896x128xbf16>
    %cst = arith.constant dense<0.000000e+00> : vector<8x128xf32>
    %2 = tpu.matmul %0, %1, %cst {dimension_numbers = #tpu.dot_dimension_numbers<[1], [0], [0], [1], [0, 0, 1, 1], [], []>} : vector<8x896xbf16>, vector<896x128xbf16>, vector<8x128xf32> -> vector<8x128xf32>
    %c0_3 = arith.constant 0 : index
    %c0_4 = arith.constant 0 : index
    %3 = vector.load %arg3[%c0_3, %c0_4] : memref<1x128xf32, #tpu.memory_space<vmem>>, vector<1x128xf32>
    %4 = vector.broadcast %3 : vector<1x128xf32> to vector<8x128xf32>
    %5 = arith.addf %2, %4 : vector<8x128xf32>
    %cst_5 = arith.constant 0.000000e+00 : f32
    %6 = vector.broadcast %cst_5 : f32 to vector<8x128xf32>
    %7 = arith.maximumf %5, %6 : vector<8x128xf32>
    %8 = arith.truncf %7 : vector<8x128xf32> to vector<8x128xbf16>
    %c0_6 = arith.constant 0 : index
    %c0_7 = arith.constant 0 : index
    %9 = vector.load %arg4[%c0_6, %c0_7] : memref<128x128xbf16, #tpu.memory_space<vmem>>, vector<128x128xbf16>
    %cst_8 = arith.constant dense<0.000000e+00> : vector<8x128xf32>
    %10 = tpu.matmul %8, %9, %cst_8 {dimension_numbers = #tpu.dot_dimension_numbers<[1], [0], [0], [1], [0, 0, 1, 1], [], []>} : vector<8x128xbf16>, vector<128x128xbf16>, vector<8x128xf32> -> vector<8x128xf32>
    %c0_9 = arith.constant 0 : index
    %c0_10 = arith.constant 0 : index
    %11 = vector.load %arg5[%c0_9, %c0_10] : memref<1x128xf32, #tpu.memory_space<vmem>>, vector<1x128xf32>
    %12 = vector.broadcast %11 : vector<1x128xf32> to vector<8x128xf32>
    %13 = arith.addf %10, %12 : vector<8x128xf32>
    %cst_11 = arith.constant 0.000000e+00 : f32
    %14 = vector.broadcast %cst_11 : f32 to vector<8x128xf32>
    %15 = arith.maximumf %13, %14 : vector<8x128xf32>
    %16 = arith.truncf %15 : vector<8x128xf32> to vector<8x128xbf16>
    %c0_12 = arith.constant 0 : index
    %c0_13 = arith.constant 0 : index
    %17 = vector.load %arg6[%c0_12, %c0_13] : memref<128x896xbf16, #tpu.memory_space<vmem>>, vector<128x896xbf16>
    %cst_14 = arith.constant dense<0.000000e+00> : vector<8x896xf32>
    %18 = tpu.matmul %16, %17, %cst_14 {dimension_numbers = #tpu.dot_dimension_numbers<[1], [0], [0], [1], [0, 0, 1, 1], [], []>} : vector<8x128xbf16>, vector<128x896xbf16>, vector<8x896xf32> -> vector<8x896xf32>
    %c0_15 = arith.constant 0 : index
    %c0_16 = arith.constant 0 : index
    %19 = vector.load %arg7[%c0_15, %c0_16] : memref<1x896xf32, #tpu.memory_space<vmem>>, vector<1x896xf32>
    %20 = vector.broadcast %19 : vector<1x896xf32> to vector<8x896xf32>
    %21 = arith.addf %18, %20 : vector<8x896xf32>
    %cst_17 = arith.constant 0.000000e+00 : f32
    %22 = vector.broadcast %cst_17 : f32 to vector<8x896xf32>
    %23 = arith.subf %22, %21 : vector<8x896xf32>
    %24 = math.exp %23 : vector<8x896xf32>
    %cst_18 = arith.constant 1.000000e+00 : f32
    %25 = vector.broadcast %cst_18 : f32 to vector<8x896xf32>
    %26 = arith.addf %25, %24 : vector<8x896xf32>
    %27 = tpu.reciprocal %26 {approx = true} : vector<8x896xf32> -> vector<8x896xf32>
    %c0_19 = arith.constant 0 : index
    %c0_20 = arith.constant 0 : index
    %28 = vector.load %arg8[%c0_19, %c0_20] : memref<8x896xf32, #tpu.memory_space<vmem>>, vector<8x896xf32>
    tpu.vector_store %arg8[%c0_19, %c0_20], %27 {strides = array<i32>} : memref<8x896xf32, #tpu.memory_space<vmem>>, vector<8x896xf32>,
    return
  }
  func.func @transform_0(%arg0: i32) -> (i32, i32) {
    %c0_i32 = arith.constant 0 : i32
    %c0_i32_0 = arith.constant 0 : i32
    return %arg0, %c0_i32 : i32, i32
  }
  func.func @transform_1(%arg0: i32) -> (i32, i32) {
    %c0_i32 = arith.constant 0 : i32
    %c0_i32_0 = arith.constant 0 : i32
    %c0_i32_1 = arith.constant 0 : i32
    return %c0_i32, %c0_i32_0 : i32, i32
  }
  func.func @transform_2(%arg0: i32) -> (i32, i32) {
    %c0_i32 = arith.constant 0 : i32
    %c0_i32_0 = arith.constant 0 : i32
    %c0_i32_1 = arith.constant 0 : i32
    return %c0_i32, %c0_i32_0 : i32, i32
  }
  func.func @transform_3(%arg0: i32) -> (i32, i32) {
    %c0_i32 = arith.constant 0 : i32
    %c0_i32_0 = arith.constant 0 : i32
    %c0_i32_1 = arith.constant 0 : i32
    return %c0_i32, %c0_i32_0 : i32, i32
  }
  func.func @transform_4(%arg0: i32) -> (i32, i32) {
    %c0_i32 = arith.constant 0 : i32
    %c0_i32_0 = arith.constant 0 : i32
    %c0_i32_1 = arith.constant 0 : i32
    return %c0_i32, %c0_i32_0 : i32, i32
  }
  func.func @transform_5(%arg0: i32) -> (i32, i32) {
    %c0_i32 = arith.constant 0 : i32
    %c0_i32_0 = arith.constant 0 : i32
    %c0_i32_1 = arith.constant 0 : i32
    return %c0_i32, %c0_i32_0 : i32, i32
  }
  func.func @transform_6(%arg0: i32) -> (i32, i32) {
    %c0_i32 = arith.constant 0 : i32
    %c0_i32_0 = arith.constant 0 : i32
    %c0_i32_1 = arith.constant 0 : i32
    return %c0_i32, %c0_i32_0 : i32, i32
  }
  func.func @transform_7(%arg0: i32) -> (i32, i32) {
    %c0_i32 = arith.constant 0 : i32
    %c0_i32_0 = arith.constant 0 : i32
    return %arg0, %c0_i32 : i32, i32
  }
}

</mosaic_0001>

<llo_original>
// kernel: tpu_custom_call.1
$region0: #{tpu_custom_call.1}
  #allocation0 [shape = 'u32[]', space=smem, size = 0x4, offset = 0x4, fixed_abs, tag = 'smem constant byte address 0x4 - core index']
  #allocation1 [shape = 'u32[72,128]{1,0:T(1,128)}', space=vmem, size = 0x9000, scoped, tag = 'internal scratch']
  %s0 = inlined_call_operand.hbm [shape: bf16[8,896], index: 0, kind: input, shape index: {}]
  %s1 = inlined_call_operand.hbm [shape: bf16[896,128], index: 1, kind: input, shape index: {}]
  %s2 = inlined_call_operand.vmem [shape: f32[1,128], index: 2, kind: input, shape index: {}]
  %s3 = inlined_call_operand.hbm [shape: bf16[128,128], index: 3, kind: input, shape index: {}]
  %s4 = inlined_call_operand.vmem [shape: f32[1,128], index: 4, kind: input, shape index: {}]
  %s5 = inlined_call_operand.hbm [shape: bf16[128,896], index: 5, kind: input, shape index: {}]
  %s6 = inlined_call_operand.hbm [shape: f32[1,896], index: 6, kind: input, shape index: {}]
  %s7 = inlined_call_operand.hbm [shape: f32[8,896], index: 7, kind: output, shape index: {}]
  %s8 = sld [smem:[#allocation0]]
  $region58: #{tpu_custom_call.1} parent=0
    _
  %s10 = ssub.s32 1, %s8
  %s11 = scalar_select 0, %s10, %s8
  $region1: #{tpu_custom_call.1} parent=0
    #allocation2 [shape = 'u8[14336]{0}', space=vmem, size = 0x3800, scoped, tag = 'input window, operand 0, single buffered']
    #allocation3 [shape = 's32[1]{0}', space=sflag, size = 0x4, scoped, tag = 'scoped memory for tpu_custom_call.1']
    #allocation4 [shape = 's32[1]{0}', space=sflag, size = 0x4, scoped, tag = 'scoped memory for tpu_custom_call.1']
    #allocation5 [shape = 'u8[229376]{0}', space=vmem, size = 0x38000, scoped, tag = 'input window, operand 1, single buffered']
    #allocation6 [shape = 's32[1]{0}', space=sflag, size = 0x4, scoped, tag = 'scoped memory for tpu_custom_call.1']
    #allocation7 [shape = 'u8[32768]{0}', space=vmem, size = 0x8000, scoped, tag = 'input window, operand 3, single buffered']
    #allocation8 [shape = 'u8[229376]{0}', space=vmem, size = 0x38000, scoped, tag = 'input window, operand 5, single buffered']
    #allocation9 [shape = 's32[1]{0}', space=sflag, size = 0x4, scoped, tag = 'scoped memory for tpu_custom_call.1']
    #allocation10 [shape = 'u8[3584]{0}', space=vmem, size = 0x1000, scoped, tag = 'input window, operand 6, single buffered']
    #allocation11 [shape = 'u8[28672]{0}', space=vmem, size = 0x7000, scoped, tag = 'output window, operand 0, single buffered']
    %12 = vsyncpa [#allocation3], 0
    %13 = vsyncpa [#allocation6], 0
    %14 = vsyncpa [#allocation9], 0
    %15 = vsyncpa [#allocation4], 0
    // Predicated region
    $region2: #{tpu_custom_call.1} parent=1 // pred_check
      _
    $region3: #{tpu_custom_call.1} parent=1 // pred_check_branch
      %17 = sbr.rel (0) target = $region5
    $region4: #{tpu_custom_call.1} parent=1 // pred_region
      %19 = vsyncadd [#allocation3], 0
      %s21 = sshll.u32 %s0, 4
      %s22 = int_to_ptr.hbm [resolvable:$true] %s21
      %s23 = sshll.u32 [#allocation2], 4
      %s24 = int_to_ptr.vmem [resolvable:$true] %s23
      %26 = dma.hbm_to_vmem [thread:$0]  %s22, 448, %s24, [#allocation3]
    $region5: #{tpu_custom_call.1} parent=1 // pred_fallthru
      _
    // Predicated region
    $region6: #{tpu_custom_call.1} parent=1 // pred_check
      _
    $region7: #{tpu_custom_call.1} parent=1 // pred_check_branch
      %28 = sbr.rel (0) target = $region9
    $region8: #{tpu_custom_call.1} parent=1 // pred_region
      %30 = vsyncadd [#allocation6], 0
      %s31 = sshll.u32 %s1, 4
      %s32 = int_to_ptr.hbm [resolvable:$true] %s31
      %s33 = sshll.u32 [#allocation5], 4
      %s34 = int_to_ptr.vmem [resolvable:$true] %s33
      %39 = dma.hbm_to_vmem [thread:$0]  %s32, 7168, %s34, [#allocation6], 64, 64, 4
    $region9: #{tpu_custom_call.1} parent=1 // pred_fallthru
      _
    // Predicated region
    $region10: #{tpu_custom_call.1} parent=1 // pred_check
      _
    $region11: #{tpu_custom_call.1} parent=1 // pred_check_branch
      %41 = sbr.rel (0) target = $region13
    $region12: #{tpu_custom_call.1} parent=1 // pred_region
      _
    $region13: #{tpu_custom_call.1} parent=1 // pred_fallthru
      _
    // Predicated region
    $region14: #{tpu_custom_call.1} parent=1 // pred_check
      _
    $region15: #{tpu_custom_call.1} parent=1 // pred_check_branch
      %43 = sbr.rel (0) target = $region17
    $region16: #{tpu_custom_call.1} parent=1 // pred_region
      %45 = vsyncadd [#allocation6], 0
      %s46 = sshll.u32 %s3, 4
      %s47 = int_to_ptr.hbm [resolvable:$true] %s46
      %s48 = sshll.u32 [#allocation7], 4
      %s49 = int_to_ptr.vmem [resolvable:$true] %s48
      %54 = dma.hbm_to_vmem [thread:$0]  %s47, 1024, %s49, [#allocation6], 64, 64, 4
    $region17: #{tpu_custom_call.1} parent=1 // pred_fallthru
      _
    // Predicated region
    $region18: #{tpu_custom_call.1} parent=1 // pred_check
      _
    $region19: #{tpu_custom_call.1} parent=1 // pred_check_branch
      %56 = sbr.rel (0) target = $region21
    $region20: #{tpu_custom_call.1} parent=1 // pred_region
      _
    $region21: #{tpu_custom_call.1} parent=1 // pred_fallthru
      _
    // Predicated region
    $region22: #{tpu_custom_call.1} parent=1 // pred_check
      _
    $region23: #{tpu_custom_call.1} parent=1 // pred_check_branch
      %58 = sbr.rel (0) target = $region25
    $region24: #{tpu_custom_call.1} parent=1 // pred_region
      %60 = vsyncadd [#allocation9], 0
      %s61 = sshll.u32 %s5, 4
      %s62 = int_to_ptr.hbm [resolvable:$true] %s61
      %s63 = sshll.u32 [#allocation8], 4
      %s64 = int_to_ptr.vmem [resolvable:$true] %s63
      %69 = dma.hbm_to_vmem [thread:$0]  %s62, 7168, %s64, [#allocation9], 448, 448, 28
    $region25: #{tpu_custom_call.1} parent=1 // pred_fallthru
      _
    // Predicated region
    $region26: #{tpu_custom_call.1} parent=1 // pred_check
      _
    $region27: #{tpu_custom_call.1} parent=1 // pred_check_branch
      %71 = sbr.rel (0) target = $region29
    $region28: #{tpu_custom_call.1} parent=1 // pred_region
      %73 = vsyncadd [#allocation9], 0
      %s75 = sshll.u32 %s6, 4
      %s76 = int_to_ptr.hbm [resolvable:$true] %s75
      %s77 = sshll.u32 [#allocation10], 4
      %s78 = int_to_ptr.vmem [resolvable:$true] %s77
      %80 = dma.hbm_to_vmem [thread:$0]  %s76, 112, %s78, [#allocation9]
    $region29: #{tpu_custom_call.1} parent=1 // pred_fallthru
      _
    // Predicated region
    $region30: #{tpu_custom_call.1} parent=1 // pred_check
      _
    $region31: #{tpu_custom_call.1} parent=1 // pred_check_branch
      %82 = sbr.rel (0) target = $region33
    $region32: #{tpu_custom_call.1} parent=1 // pred_region
      %84 = dma.done [#allocation3], 448
    $region33: #{tpu_custom_call.1} parent=1 // pred_fallthru
      _
    // Predicated region
    $region34: #{tpu_custom_call.1} parent=1 // pred_check
      _
    $region35: #{tpu_custom_call.1} parent=1 // pred_check_branch
      %86 = sbr.rel (0) target = $region37
    $region36: #{tpu_custom_call.1} parent=1 // pred_region
      %88 = dma.done [#allocation6], 7168
    $region37: #{tpu_custom_call.1} parent=1 // pred_fallthru
      _
    // Predicated region
    $region38: #{tpu_custom_call.1} parent=1 // pred_check
      _
    $region39: #{tpu_custom_call.1} parent=1 // pred_check_branch
      %90 = sbr.rel (0) target = $region41
    $region40: #{tpu_custom_call.1} parent=1 // pred_region
      %92 = dma.done [#allocation6], 1024
    $region41: #{tpu_custom_call.1} parent=1 // pred_fallthru
      _
    // Predicated region
    $region42: #{tpu_custom_call.1} parent=1 // pred_check
      _
    $region43: #{tpu_custom_call.1} parent=1 // pred_check_branch
      %94 = sbr.rel (0) target = $region45
    $region44: #{tpu_custom_call.1} parent=1 // pred_region
      %96 = dma.done [#allocation9], 7168
    $region45: #{tpu_custom_call.1} parent=1 // pred_fallthru
      _
    // Predicated region
    $region46: #{tpu_custom_call.1} parent=1 // pred_check
      _
    $region47: #{tpu_custom_call.1} parent=1 // pred_check_branch
      %98 = sbr.rel (0) target = $region49
    $region48: #{tpu_custom_call.1} parent=1 // pred_region
      %100 = dma.done [#allocation9], 112
    $region49: #{tpu_custom_call.1} parent=1 // pred_fallthru
      _
    %v101 = vld [vmem:[#allocation2] sm:$0xff]
    %v102 = vld [vmem:[#allocation2 + $0x8] sm:$0xff]
    %v103 = vld [vmem:[#allocation2 + $0x10] sm:$0xff]
    %v104 = vld [vmem:[#allocation2 + $0x18] sm:$0xf]
    %v105 = vld [vmem:[#allocation5] sm:$0xf]
    %v106 = vld [vmem:[#allocation5 + $0x4] sm:$0xf]
    %v107 = vld [vmem:[#allocation5 + $0x8] sm:$0xf]
    %v108 = vld [vmem:[#allocation5 + $0xc] sm:$0xf]
    %v109 = vld [vmem:[#allocation5 + $0x10] sm:$0xf]
    %v110 = vld [vmem:[#allocation5 + $0x14] sm:$0xf]
    %v111 = vld [vmem:[#allocation5 + $0x18] sm:$0xf]
    %v112 = vld [vmem:[#allocation5 + $0x1c] sm:$0xf]
    %v113 = vld [vmem:[#allocation5 + $0x20] sm:$0xf]
    %v114 = vld [vmem:[#allocation5 + $0x24] sm:$0xf]
    %v115 = vld [vmem:[#allocation5 + $0x28] sm:$0xf]
    %v116 = vld [vmem:[#allocation5 + $0x2c] sm:$0xf]
    %v117 = vld [vmem:[#allocation5 + $0x30] sm:$0xf]
    %v118 = vld [vmem:[#allocation5 + $0x34] sm:$0xf]
    %v119 = vld [vmem:[#allocation5 + $0x38] sm:$0xf]
    %v120 = vld [vmem:[#allocation5 + $0x3c] sm:$0xf]
    %v121 = vld [vmem:[#allocation5 + $0x40] sm:$0xf]
    %v122 = vld [vmem:[#allocation5 + $0x44] sm:$0xf]
    %v123 = vld [vmem:[#allocation5 + $0x48] sm:$0xf]
    %v124 = vld [vmem:[#allocation5 + $0x4c] sm:$0xf]
    %v125 = vld [vmem:[#allocation5 + $0x50] sm:$0xf]
    %v126 = vld [vmem:[#allocation5 + $0x54] sm:$0xf]
    %v127 = vld [vmem:[#allocation5 + $0x58] sm:$0xf]
    %v128 = vld [vmem:[#allocation5 + $0x5c] sm:$0xf]
    %v129 = vld [vmem:[#allocation5 + $0x60] sm:$0xf]
    %v130 = vld [vmem:[#allocation5 + $0x64] sm:$0xf]
    %v131 = vld [vmem:[#allocation5 + $0x68] sm:$0xf]
    %v132 = vld [vmem:[#allocation5 + $0x6c] sm:$0xf]
    %v133 = vld [vmem:[#allocation5 + $0x70] sm:$0xf]
    %v134 = vld [vmem:[#allocation5 + $0x74] sm:$0xf]
    %v135 = vld [vmem:[#allocation5 + $0x78] sm:$0xf]
    %v136 = vld [vmem:[#allocation5 + $0x7c] sm:$0xf]
    %v137 = vld [vmem:[#allocation5 + $0x80] sm:$0xf]
    %v138 = vld [vmem:[#allocation5 + $0x84] sm:$0xf]
    %v139 = vld [vmem:[#allocation5 + $0x88] sm:$0xf]
    %v140 = vld [vmem:[#allocation5 + $0x8c] sm:$0xf]
    %v141 = vld [vmem:[#allocation5 + $0x90] sm:$0xf]
    %v142 = vld [vmem:[#allocation5 + $0x94] sm:$0xf]
    %v143 = vld [vmem:[#allocation5 + $0x98] sm:$0xf]
    %v144 = vld [vmem:[#allocation5 + $0x9c] sm:$0xf]
    %v145 = vld [vmem:[#allocation5 + $0xa0] sm:$0xf]
    %v146 = vld [vmem:[#allocation5 + $0xa4] sm:$0xf]
    %v147 = vld [vmem:[#allocation5 + $0xa8] sm:$0xf]
    %v148 = vld [vmem:[#allocation5 + $0xac] sm:$0xf]
    %v149 = vld [vmem:[#allocation5 + $0xb0] sm:$0xf]
    %v150 = vld [vmem:[#allocation5 + $0xb4] sm:$0xf]
    %v151 = vld [vmem:[#allocation5 + $0xb8] sm:$0xf]
    %v152 = vld [vmem:[#allocation5 + $0xbc] sm:$0xf]
    %v153 = vld [vmem:[#allocation5 + $0xc0] sm:$0xf]
    %v154 = vld [vmem:[#allocation5 + $0xc4] sm:$0xf]
    %v155 = vld [vmem:[#allocation5 + $0xc8] sm:$0xf]
    %v156 = vld [vmem:[#allocation5 + $0xcc] sm:$0xf]
    %v157 = vld [vmem:[#allocation5 + $0xd0] sm:$0xf]
    %v158 = vld [vmem:[#allocation5 + $0xd4] sm:$0xf]
    %v159 = vld [vmem:[#allocation5 + $0xd8] sm:$0xf]
    %v160 = vld [vmem:[#allocation5 + $0xdc] sm:$0xf]
    %v161 = vld [vmem:[#allocation5 + $0xe0] sm:$0xf]
    %v162 = vld [vmem:[#allocation5 + $0xe4] sm:$0xf]
    %v163 = vld [vmem:[#allocation5 + $0xe8] sm:$0xf]
    %v164 = vld [vmem:[#allocation5 + $0xec] sm:$0xf]
    %v165 = vld [vmem:[#allocation5 + $0xf0] sm:$0xf]
    %v166 = vld [vmem:[#allocation5 + $0xf4] sm:$0xf]
    %v167 = vld [vmem:[#allocation5 + $0xf8] sm:$0xf]
    %v168 = vld [vmem:[#allocation5 + $0xfc] sm:$0xf]
    %v169 = vld [vmem:[#allocation5 + $0x100] sm:$0xf]
    %v170 = vld [vmem:[#allocation5 + $0x104] sm:$0xf]
    %v171 = vld [vmem:[#allocation5 + $0x108] sm:$0xf]
    %v172 = vld [vmem:[#allocation5 + $0x10c] sm:$0xf]
    %v173 = vld [vmem:[#allocation5 + $0x110] sm:$0xf]
    %v174 = vld [vmem:[#allocation5 + $0x114] sm:$0xf]
    %v175 = vld [vmem:[#allocation5 + $0x118] sm:$0xf]
    %v176 = vld [vmem:[#allocation5 + $0x11c] sm:$0xf]
    %v177 = vld [vmem:[#allocation5 + $0x120] sm:$0xf]
    %v178 = vld [vmem:[#allocation5 + $0x124] sm:$0xf]
    %v179 = vld [vmem:[#allocation5 + $0x128] sm:$0xf]
    %v180 = vld [vmem:[#allocation5 + $0x12c] sm:$0xf]
    %v181 = vld [vmem:[#allocation5 + $0x130] sm:$0xf]
    %v182 = vld [vmem:[#allocation5 + $0x134] sm:$0xf]
    %v183 = vld [vmem:[#allocation5 + $0x138] sm:$0xf]
    %v184 = vld [vmem:[#allocation5 + $0x13c] sm:$0xf]
    %v185 = vld [vmem:[#allocation5 + $0x140] sm:$0xf]
    %v186 = vld [vmem:[#allocation5 + $0x144] sm:$0xf]
    %v187 = vld [vmem:[#allocation5 + $0x148] sm:$0xf]
    %v188 = vld [vmem:[#allocation5 + $0x14c] sm:$0xf]
    %v189 = vld [vmem:[#allocation5 + $0x150] sm:$0xf]
    %v190 = vld [vmem:[#allocation5 + $0x154] sm:$0xf]
    %v191 = vld [vmem:[#allocation5 + $0x158] sm:$0xf]
    %v192 = vld [vmem:[#allocation5 + $0x15c] sm:$0xf]
    %v193 = vld [vmem:[#allocation5 + $0x160] sm:$0xf]
    %v194 = vld [vmem:[#allocation5 + $0x164] sm:$0xf]
    %v195 = vld [vmem:[#allocation5 + $0x168] sm:$0xf]
    %v196 = vld [vmem:[#allocation5 + $0x16c] sm:$0xf]
    %v197 = vld [vmem:[#allocation5 + $0x170] sm:$0xf]
    %v198 = vld [vmem:[#allocation5 + $0x174] sm:$0xf]
    %v199 = vld [vmem:[#allocation5 + $0x178] sm:$0xf]
    %v200 = vld [vmem:[#allocation5 + $0x17c] sm:$0xf]
    %v201 = vld [vmem:[#allocation5 + $0x180] sm:$0xf]
    %v202 = vld [vmem:[#allocation5 + $0x184] sm:$0xf]
    %v203 = vld [vmem:[#allocation5 + $0x188] sm:$0xf]
    %v204 = vld [vmem:[#allocation5 + $0x18c] sm:$0xf]
    %v205 = vld [vmem:[#allocation5 + $0x190] sm:$0xf]
    %v206 = vld [vmem:[#allocation5 + $0x194] sm:$0xf]
    %v207 = vld [vmem:[#allocation5 + $0x198] sm:$0xf]
    %v208 = vld [vmem:[#allocation5 + $0x19c] sm:$0xf]
    %v209 = vld [vmem:[#allocation5 + $0x1a0] sm:$0xf]
    %v210 = vld [vmem:[#allocation5 + $0x1a4] sm:$0xf]
    %v211 = vld [vmem:[#allocation5 + $0x1a8] sm:$0xf]
    %v212 = vld [vmem:[#allocation5 + $0x1ac] sm:$0xf]
    %v213 = vld [vmem:[#allocation5 + $0x1b0] sm:$0xf]
    %v214 = vld [vmem:[#allocation5 + $0x1b4] sm:$0xf]
    %v215 = vld [vmem:[#allocation5 + $0x1b8] sm:$0xf]
    %v216 = vld [vmem:[#allocation5 + $0x1bc] sm:$0xf]
    %v217 = vld [vmem:[%s2] sm:$0x1]
    %v219 = vperm.slane %v217, 0
    %v225 = vunpack.c.l.b16 %v101
    %v226 = vunpack.c.h.b16 %v101
    %v227 = vunpack.c.l.b16 %v102
    %v228 = vunpack.c.h.b16 %v102
    %v229 = vunpack.c.l.b16 %v103
    %v230 = vunpack.c.h.b16 %v103
    %v231 = vunpack.c.l.b16 %v104
    %v232 = vpack.c.b16 %v225, %v225
    %v233 = vpack.c.b16 %v226, %v226
    %v234 = vpack.c.b16 %v227, %v227
    %v235 = vpack.c.b16 %v228, %v228
    %v236 = vpack.c.b16 %v229, %v229
    %v237 = vpack.c.b16 %v230, %v230
    %v238 = vpack.c.b16 %v231, %v231
    %v358 = vunpack.c.l.b16 %v105
    %v359 = vunpack.c.l.b16 %v106
    %v360 = vunpack.c.l.b16 %v107
    %v361 = vunpack.c.l.b16 %v108
    %v362 = vunpack.c.l.b16 %v109
    %v363 = vunpack.c.l.b16 %v110
    %v364 = vunpack.c.l.b16 %v111
    %v365 = vunpack.c.l.b16 %v112
    %v366 = vunpack.c.l.b16 %v113
    %v367 = vunpack.c.l.b16 %v114
    %v368 = vunpack.c.l.b16 %v115
    %v369 = vunpack.c.l.b16 %v116
    %v370 = vunpack.c.l.b16 %v117
    %v371 = vunpack.c.l.b16 %v118
    %v372 = vunpack.c.l.b16 %v119
    %v373 = vunpack.c.l.b16 %v120
    %v374 = vunpack.c.l.b16 %v121
    %v375 = vunpack.c.l.b16 %v122
    %v376 = vunpack.c.l.b16 %v123
    %v377 = vunpack.c.l.b16 %v124
    %v378 = vunpack.c.l.b16 %v125
    %v379 = vunpack.c.l.b16 %v126
    %v380 = vunpack.c.l.b16 %v127
    %v381 = vunpack.c.l.b16 %v128
    %v382 = vunpack.c.l.b16 %v129
    %v383 = vunpack.c.l.b16 %v130
    %v384 = vunpack.c.l.b16 %v131
    %v385 = vunpack.c.l.b16 %v132
    %v386 = vunpack.c.l.b16 %v133
    %v387 = vunpack.c.l.b16 %v134
    %v388 = vunpack.c.l.b16 %v135
    %v389 = vunpack.c.l.b16 %v136
    %v390 = vunpack.c.l.b16 %v137
    %v391 = vunpack.c.l.b16 %v138
    %v392 = vunpack.c.l.b16 %v139
    %v393 = vunpack.c.l.b16 %v140
    %v394 = vunpack.c.l.b16 %v141
    %v395 = vunpack.c.l.b16 %v142
    %v396 = vunpack.c.l.b16 %v143
    %v397 = vunpack.c.l.b16 %v144
    %v398 = vunpack.c.l.b16 %v145
    %v399 = vunpack.c.l.b16 %v146
    %v400 = vunpack.c.l.b16 %v147
    %v401 = vunpack.c.l.b16 %v148
    %v402 = vunpack.c.l.b16 %v149
    %v403 = vunpack.c.l.b16 %v150
    %v404 = vunpack.c.l.b16 %v151
    %v405 = vunpack.c.l.b16 %v152
    %v406 = vunpack.c.l.b16 %v153
    %v407 = vunpack.c.l.b16 %v154
    %v408 = vunpack.c.l.b16 %v155
    %v409 = vunpack.c.l.b16 %v156
    %v410 = vunpack.c.l.b16 %v157
    %v411 = vunpack.c.l.b16 %v158
    %v412 = vunpack.c.l.b16 %v159
    %v413 = vunpack.c.l.b16 %v160
    %v414 = vunpack.c.l.b16 %v161
    %v415 = vunpack.c.l.b16 %v162
    %v416 = vunpack.c.l.b16 %v163
    %v417 = vunpack.c.l.b16 %v164
    %v418 = vunpack.c.l.b16 %v165
    %v419 = vunpack.c.l.b16 %v166
    %v420 = vunpack.c.l.b16 %v167
    %v421 = vunpack.c.l.b16 %v168
    %v422 = vunpack.c.l.b16 %v169
    %v423 = vunpack.c.l.b16 %v170
    %v424 = vunpack.c.l.b16 %v171
    %v425 = vunpack.c.l.b16 %v172
    %v426 = vunpack.c.l.b16 %v173
    %v427 = vunpack.c.l.b16 %v174
    %v428 = vunpack.c.l.b16 %v175
    %v429 = vunpack.c.l.b16 %v176
    %v430 = vunpack.c.l.b16 %v177
    %v431 = vunpack.c.l.b16 %v178
    %v432 = vunpack.c.l.b16 %v179
    %v433 = vunpack.c.l.b16 %v180
    %v434 = vunpack.c.l.b16 %v181
    %v435 = vunpack.c.l.b16 %v182
    %v436 = vunpack.c.l.b16 %v183
    %v437 = vunpack.c.l.b16 %v184
    %v438 = vunpack.c.l.b16 %v185
    %v439 = vunpack.c.l.b16 %v186
    %v440 = vunpack.c.l.b16 %v187
    %v441 = vunpack.c.l.b16 %v188
    %v442 = vunpack.c.l.b16 %v189
    %v443 = vunpack.c.l.b16 %v190
    %v444 = vunpack.c.l.b16 %v191
    %v445 = vunpack.c.l.b16 %v192
    %v446 = vunpack.c.l.b16 %v193
    %v447 = vunpack.c.l.b16 %v194
    %v448 = vunpack.c.l.b16 %v195
    %v449 = vunpack.c.l.b16 %v196
    %v450 = vunpack.c.l.b16 %v197
    %v451 = vunpack.c.l.b16 %v198
    %v452 = vunpack.c.l.b16 %v199
    %v453 = vunpack.c.l.b16 %v200
    %v454 = vunpack.c.l.b16 %v201
    %v455 = vunpack.c.l.b16 %v202
    %v456 = vunpack.c.l.b16 %v203
    %v457 = vunpack.c.l.b16 %v204
    %v458 = vunpack.c.l.b16 %v205
    %v459 = vunpack.c.l.b16 %v206
    %v460 = vunpack.c.l.b16 %v207
    %v461 = vunpack.c.l.b16 %v208
    %v462 = vunpack.c.l.b16 %v209
    %v463 = vunpack.c.l.b16 %v210
    %v464 = vunpack.c.l.b16 %v211
    %v465 = vunpack.c.l.b16 %v212
    %v466 = vunpack.c.l.b16 %v213
    %v467 = vunpack.c.l.b16 %v214
    %v468 = vunpack.c.l.b16 %v215
    %v469 = vunpack.c.l.b16 %v216
    %v470 = vpack.c.b16 %v359, %v358
    %v471 = vpack.c.b16 %v361, %v360
    %v472 = vpack.c.b16 %v363, %v362
    %v473 = vpack.c.b16 %v365, %v364
    %v474 = vpack.c.b16 %v367, %v366
    %v475 = vpack.c.b16 %v369, %v368
    %v476 = vpack.c.b16 %v371, %v370
    %v477 = vpack.c.b16 %v373, %v372
    %v478 = vpack.c.b16 %v375, %v374
    %v479 = vpack.c.b16 %v377, %v376
    %v480 = vpack.c.b16 %v379, %v378
    %v481 = vpack.c.b16 %v381, %v380
    %v482 = vpack.c.b16 %v383, %v382
    %v483 = vpack.c.b16 %v385, %v384
    %v484 = vpack.c.b16 %v387, %v386
    %v485 = vpack.c.b16 %v389, %v388
    %v486 = vpack.c.b16 %v391, %v390
    %v487 = vpack.c.b16 %v393, %v392
    %v488 = vpack.c.b16 %v395, %v394
    %v489 = vpack.c.b16 %v397, %v396
    %v490 = vpack.c.b16 %v399, %v398
    %v491 = vpack.c.b16 %v401, %v400
    %v492 = vpack.c.b16 %v403, %v402
    %v493 = vpack.c.b16 %v405, %v404
    %v494 = vpack.c.b16 %v407, %v406
    %v495 = vpack.c.b16 %v409, %v408
    %v496 = vpack.c.b16 %v411, %v410
    %v497 = vpack.c.b16 %v413, %v412
    %v498 = vpack.c.b16 %v415, %v414
    %v499 = vpack.c.b16 %v417, %v416
    %v500 = vpack.c.b16 %v419, %v418
    %v501 = vpack.c.b16 %v421, %v420
    %v502 = vpack.c.b16 %v423, %v422
    %v503 = vpack.c.b16 %v425, %v424
    %v504 = vpack.c.b16 %v427, %v426
    %v505 = vpack.c.b16 %v429, %v428
    %v506 = vpack.c.b16 %v431, %v430
    %v507 = vpack.c.b16 %v433, %v432
    %v508 = vpack.c.b16 %v435, %v434
    %v509 = vpack.c.b16 %v437, %v436
    %v510 = vpack.c.b16 %v439, %v438
    %v511 = vpack.c.b16 %v441, %v440
    %v512 = vpack.c.b16 %v443, %v442
    %v513 = vpack.c.b16 %v445, %v444
    %v514 = vpack.c.b16 %v447, %v446
    %v515 = vpack.c.b16 %v449, %v448
    %v516 = vpack.c.b16 %v451, %v450
    %v517 = vpack.c.b16 %v453, %v452
    %v518 = vpack.c.b16 %v455, %v454
    %v519 = vpack.c.b16 %v457, %v456
    %v520 = vpack.c.b16 %v459, %v458
    %v521 = vpack.c.b16 %v461, %v460
    %v522 = vpack.c.b16 %v463, %v462
    %v523 = vpack.c.b16 %v465, %v464
    %v524 = vpack.c.b16 %v467, %v466
    %v525 = vpack.c.b16 %v469, %v468
    %582 = vmatpush.bf16.msra.mxu0 %v477
    %583 = vmatpush.bf16.msra.mxu0 %v476
    %584 = vmatpush.bf16.msra.mxu0 %v475
    %585 = vmatpush.bf16.msra.mxu0 %v474
    %586 = vmatpush.bf16.msra.mxu0 %v473
    %587 = vmatpush.bf16.msra.mxu0 %v472
    %588 = vmatpush.bf16.msra.mxu0 %v471
    %589 = vmatpush.bf16.msra.mxu0 %v470
    %590 = vmatmul.bf16.gmra.mxu0 %v232
    %v591 = vpop.f32.mrf.mxu0
    %v592 = vadd.f32 %v219, %v591
    %v593 = vpop.f32.mrf.mxu0
    %594 = vdwg.mxu0
    %595 = vmatpush.bf16.msra.mxu0 %v485
    %596 = vmatpush.bf16.msra.mxu0 %v484
    %597 = vmatpush.bf16.msra.mxu0 %v483
    %598 = vmatpush.bf16.msra.mxu0 %v482
    %599 = vmatpush.bf16.msra.mxu0 %v481
    %600 = vmatpush.bf16.msra.mxu0 %v480
    %601 = vmatpush.bf16.msra.mxu0 %v479
    %602 = vmatpush.bf16.msra.mxu0 %v478
    %603 = vmatmul.bf16.gmra.mxu0 %v233
    %v604 = vpop.f32.mrf.mxu0
    %v605 = vadd.f32 %v592, %v604
    %v606 = vpop.f32.mrf.mxu0
    %607 = vdwg.mxu0
    %608 = vmatpush.bf16.msra.mxu0 %v493
    %609 = vmatpush.bf16.msra.mxu0 %v492
    %610 = vmatpush.bf16.msra.mxu0 %v491
    %611 = vmatpush.bf16.msra.mxu0 %v490
    %612 = vmatpush.bf16.msra.mxu0 %v489
    %613 = vmatpush.bf16.msra.mxu0 %v488
    %614 = vmatpush.bf16.msra.mxu0 %v487
    %615 = vmatpush.bf16.msra.mxu0 %v486
    %616 = vmatmul.bf16.gmra.mxu0 %v234
    %v617 = vpop.f32.mrf.mxu0
    %v618 = vadd.f32 %v605, %v617
    %v619 = vpop.f32.mrf.mxu0
    %620 = vdwg.mxu0
    %621 = vmatpush.bf16.msra.mxu0 %v501
    %622 = vmatpush.bf16.msra.mxu0 %v500
    %623 = vmatpush.bf16.msra.mxu0 %v499
    %624 = vmatpush.bf16.msra.mxu0 %v498
    %625 = vmatpush.bf16.msra.mxu0 %v497
    %626 = vmatpush.bf16.msra.mxu0 %v496
    %627 = vmatpush.bf16.msra.mxu0 %v495
    %628 = vmatpush.bf16.msra.mxu0 %v494
    %629 = vmatmul.bf16.gmra.mxu0 %v235
    %v630 = vpop.f32.mrf.mxu0
    %v631 = vadd.f32 %v618, %v630
    %v632 = vpop.f32.mrf.mxu0
    %633 = vdwg.mxu0
    %634 = vmatpush.bf16.msra.mxu0 %v509
    %635 = vmatpush.bf16.msra.mxu0 %v508
    %636 = vmatpush.bf16.msra.mxu0 %v507
    %637 = vmatpush.bf16.msra.mxu0 %v506
    %638 = vmatpush.bf16.msra.mxu0 %v505
    %639 = vmatpush.bf16.msra.mxu0 %v504
    %640 = vmatpush.bf16.msra.mxu0 %v503
    %641 = vmatpush.bf16.msra.mxu0 %v502
    %642 = vmatmul.bf16.gmra.mxu0 %v236
    %v643 = vpop.f32.mrf.mxu0
    %v644 = vadd.f32 %v631, %v643
    %v645 = vpop.f32.mrf.mxu0
    %646 = vdwg.mxu0
    %647 = vmatpush.bf16.msra.mxu0 %v517
    %648 = vmatpush.bf16.msra.mxu0 %v516
    %649 = vmatpush.bf16.msra.mxu0 %v515
    %650 = vmatpush.bf16.msra.mxu0 %v514
    %651 = vmatpush.bf16.msra.mxu0 %v513
    %652 = vmatpush.bf16.msra.mxu0 %v512
    %653 = vmatpush.bf16.msra.mxu0 %v511
    %654 = vmatpush.bf16.msra.mxu0 %v510
    %655 = vmatmul.bf16.gmra.mxu0 %v237
    %v656 = vpop.f32.mrf.mxu0
    %v657 = vadd.f32 %v644, %v656
    %v658 = vpop.f32.mrf.mxu0
    %659 = vdwg.mxu0
    %660 = vmatpush.bf16.msra.mxu0 %v525
    %661 = vmatpush.bf16.msra.mxu0 %v524
    %662 = vmatpush.bf16.msra.mxu0 %v523
    %663 = vmatpush.bf16.msra.mxu0 %v522
    %664 = vmatpush.bf16.msra.mxu0 %v521
    %665 = vmatpush.bf16.msra.mxu0 %v520
    %666 = vmatpush.bf16.msra.mxu0 %v519
    %667 = vmatpush.bf16.msra.mxu0 %v518
    %668 = vmatmul.bf16.gmra.mxu0 %v238
    %v669 = vpop.f32.mrf.mxu0
    %v670 = vadd.f32 %v657, %v669
    %v671 = vpop.f32.mrf.mxu0
    %672 = vdwg.mxu0
    %v673 = vmax.f32 %v670, 0.0
    %v674 = vpack.c.bf16 %v673, %v673
    %v675 = vld [vmem:[#allocation7] sm:$0xf]
    %v676 = vld [vmem:[#allocation7 + $0x4] sm:$0xf]
    %v677 = vld [vmem:[#allocation7 + $0x8] sm:$0xf]
    %v678 = vld [vmem:[#allocation7 + $0xc] sm:$0xf]
    %v679 = vld [vmem:[#allocation7 + $0x10] sm:$0xf]
    %v680 = vld [vmem:[#allocation7 + $0x14] sm:$0xf]
    %v681 = vld [vmem:[#allocation7 + $0x18] sm:$0xf]
    %v682 = vld [vmem:[#allocation7 + $0x1c] sm:$0xf]
    %v683 = vld [vmem:[#allocation7 + $0x20] sm:$0xf]
    %v684 = vld [vmem:[#allocation7 + $0x24] sm:$0xf]
    %v685 = vld [vmem:[#allocation7 + $0x28] sm:$0xf]
    %v686 = vld [vmem:[#allocation7 + $0x2c] sm:$0xf]
    %v687 = vld [vmem:[#allocation7 + $0x30] sm:$0xf]
    %v688 = vld [vmem:[#allocation7 + $0x34] sm:$0xf]
    %v689 = vld [vmem:[#allocation7 + $0x38] sm:$0xf]
    %v690 = vld [vmem:[#allocation7 + $0x3c] sm:$0xf]
    %v691 = vld [vmem:[%s4] sm:$0x1]
    %v693 = vperm.slane %v691, 0
    %v711 = vunpack.c.l.b16 %v675
    %v712 = vunpack.c.l.b16 %v676
    %v713 = vunpack.c.l.b16 %v677
    %v714 = vunpack.c.l.b16 %v678
    %v715 = vunpack.c.l.b16 %v679
    %v716 = vunpack.c.l.b16 %v680
    %v717 = vunpack.c.l.b16 %v681
    %v718 = vunpack.c.l.b16 %v682
    %v719 = vunpack.c.l.b16 %v683
    %v720 = vunpack.c.l.b16 %v684
    %v721 = vunpack.c.l.b16 %v685
    %v722 = vunpack.c.l.b16 %v686
    %v723 = vunpack.c.l.b16 %v687
    %v724 = vunpack.c.l.b16 %v688
    %v725 = vunpack.c.l.b16 %v689
    %v726 = vunpack.c.l.b16 %v690
    %v727 = vpack.c.b16 %v712, %v711
    %v728 = vpack.c.b16 %v714, %v713
    %v729 = vpack.c.b16 %v716, %v715
    %v730 = vpack.c.b16 %v718, %v717
    %v731 = vpack.c.b16 %v720, %v719
    %v732 = vpack.c.b16 %v722, %v721
    %v733 = vpack.c.b16 %v724, %v723
    %v734 = vpack.c.b16 %v726, %v725
    %743 = vmatpush.bf16.msra.mxu0 %v734
    %744 = vmatpush.bf16.msra.mxu0 %v733
    %745 = vmatpush.bf16.msra.mxu0 %v732
    %746 = vmatpush.bf16.msra.mxu0 %v731
    %747 = vmatpush.bf16.msra.mxu0 %v730
    %748 = vmatpush.bf16.msra.mxu0 %v729
    %749 = vmatpush.bf16.msra.mxu0 %v728
    %750 = vmatpush.bf16.msra.mxu0 %v727
    %751 = vmatmul.bf16.gmra.mxu0 %v674
    %v752 = vpop.f32.mrf.mxu0
    %v753 = vadd.f32 %v693, %v752
    %v754 = vpop.f32.mrf.mxu0
    %755 = vdwg.mxu0
    %v756 = vmax.f32 %v753, 0.0
    %v757 = vpack.c.bf16 %v756, %v756
    %v758 = vld [vmem:[#allocation8] sm:$0xff]
    %v759 = vld [vmem:[#allocation8 + $0x8] sm:$0xff]
    %v760 = vld [vmem:[#allocation8 + $0x10] sm:$0xff]
    %v761 = vld [vmem:[#allocation8 + $0x18] sm:$0xf]
    %v762 = vld [vmem:[#allocation8 + $0x1c] sm:$0xff]
    %v763 = vld [vmem:[#allocation8 + $0x24] sm:$0xff]
    %v764 = vld [vmem:[#allocation8 + $0x2c] sm:$0xff]
    %v765 = vld [vmem:[#allocation8 + $0x34] sm:$0xf]
    %v766 = vld [vmem:[#allocation8 + $0x38] sm:$0xff]
    %v767 = vld [vmem:[#allocation8 + $0x40] sm:$0xff]
    %v768 = vld [vmem:[#allocation8 + $0x48] sm:$0xff]
    %v769 = vld [vmem:[#allocation8 + $0x50] sm:$0xf]
    %v770 = vld [vmem:[#allocation8 + $0x54] sm:$0xff]
    %v771 = vld [vmem:[#allocation8 + $0x5c] sm:$0xff]
    %v772 = vld [vmem:[#allocation8 + $0x64] sm:$0xff]
    %v773 = vld [vmem:[#allocation8 + $0x6c] sm:$0xf]
    %v774 = vld [vmem:[#allocation8 + $0x70] sm:$0xff]
    %v775 = vld [vmem:[#allocation8 + $0x78] sm:$0xff]
    %v776 = vld [vmem:[#allocation8 + $0x80] sm:$0xff]
    %v777 = vld [vmem:[#allocation8 + $0x88] sm:$0xf]
    %v778 = vld [vmem:[#allocation8 + $0x8c] sm:$0xff]
    %v779 = vld [vmem:[#allocation8 + $0x94] sm:$0xff]
    %v780 = vld [vmem:[#allocation8 + $0x9c] sm:$0xff]
    %v781 = vld [vmem:[#allocation8 + $0xa4] sm:$0xf]
    %v782 = vld [vmem:[#allocation8 + $0xa8] sm:$0xff]
    %v783 = vld [vmem:[#allocation8 + $0xb0] sm:$0xff]
    %v784 = vld [vmem:[#allocation8 + $0xb8] sm:$0xff]
    %v785 = vld [vmem:[#allocation8 + $0xc0] sm:$0xf]
    %v786 = vld [vmem:[#allocation8 + $0xc4] sm:$0xff]
    %v787 = vld [vmem:[#allocation8 + $0xcc] sm:$0xff]
    %v788 = vld [vmem:[#allocation8 + $0xd4] sm:$0xff]
    %v789 = vld [vmem:[#allocation8 + $0xdc] sm:$0xf]
    %v790 = vld [vmem:[#allocation8 + $0xe0] sm:$0xff]
    %v791 = vld [vmem:[#allocation8 + $0xe8] sm:$0xff]
    %v792 = vld [vmem:[#allocation8 + $0xf0] sm:$0xff]
    %v793 = vld [vmem:[#allocation8 + $0xf8] sm:$0xf]
    %v794 = vld [vmem:[#allocation8 + $0xfc] sm:$0xff]
    %v795 = vld [vmem:[#allocation8 + $0x104] sm:$0xff]
    %v796 = vld [vmem:[#allocation8 + $0x10c] sm:$0xff]
    %v797 = vld [vmem:[#allocation8 + $0x114] sm:$0xf]
    %v798 = vld [vmem:[#allocation8 + $0x118] sm:$0xff]
    %v799 = vld [vmem:[#allocation8 + $0x120] sm:$0xff]
    %v800 = vld [vmem:[#allocation8 + $0x128] sm:$0xff]
    %v801 = vld [vmem:[#allocation8 + $0x130] sm:$0xf]
    %v802 = vld [vmem:[#allocation8 + $0x134] sm:$0xff]
    %v803 = vld [vmem:[#allocation8 + $0x13c] sm:$0xff]
    %v804 = vld [vmem:[#allocation8 + $0x144] sm:$0xff]
    %v805 = vld [vmem:[#allocation8 + $0x14c] sm:$0xf]
    %v806 = vld [vmem:[#allocation8 + $0x150] sm:$0xff]
    %v807 = vld [vmem:[#allocation8 + $0x158] sm:$0xff]
    %v808 = vld [vmem:[#allocation8 + $0x160] sm:$0xff]
    %v809 = vld [vmem:[#allocation8 + $0x168] sm:$0xf]
    %v810 = vld [vmem:[#allocation8 + $0x16c] sm:$0xff]
    %v811 = vld [vmem:[#allocation8 + $0x174] sm:$0xff]
    %v812 = vld [vmem:[#allocation8 + $0x17c] sm:$0xff]
    %v813 = vld [vmem:[#allocation8 + $0x184] sm:$0xf]
    %v814 = vld [vmem:[#allocation8 + $0x188] sm:$0xff]
    %v815 = vld [vmem:[#allocation8 + $0x190] sm:$0xff]
    %v816 = vld [vmem:[#allocation8 + $0x198] sm:$0xff]
    %v817 = vld [vmem:[#allocation8 + $0x1a0] sm:$0xf]
    %v818 = vld [vmem:[#allocation8 + $0x1a4] sm:$0xff]
    %v819 = vld [vmem:[#allocation8 + $0x1ac] sm:$0xff]
    %v820 = vld [vmem:[#allocation8 + $0x1b4] sm:$0xff]
    %v821 = vld [vmem:[#allocation8 + $0x1bc] sm:$0xf]
    %v822 = vld [vmem:[#allocation10] sm:$0xff]
    %v824 = vperm.slane %v822, 0
    %v825 = vperm.slane %v822, 1
    %v826 = vperm.slane %v822, 2
    %v827 = vperm.slane %v822, 3
    %v828 = vperm.slane %v822, 4
    %v829 = vperm.slane %v822, 5
    %v830 = vperm.slane %v822, 6
    %v902 = vunpack.c.l.b16 %v758
    %v903 = vunpack.c.h.b16 %v758
    %v904 = vunpack.c.l.b16 %v759
    %v905 = vunpack.c.h.b16 %v759
    %v906 = vunpack.c.l.b16 %v760
    %v907 = vunpack.c.h.b16 %v760
    %v908 = vunpack.c.l.b16 %v761
    %v909 = vunpack.c.l.b16 %v762
    %v910 = vunpack.c.h.b16 %v762
    %v911 = vunpack.c.l.b16 %v763
    %v912 = vunpack.c.h.b16 %v763
    %v913 = vunpack.c.l.b16 %v764
    %v914 = vunpack.c.h.b16 %v764
    %v915 = vunpack.c.l.b16 %v765
    %v916 = vunpack.c.l.b16 %v766
    %v917 = vunpack.c.h.b16 %v766
    %v918 = vunpack.c.l.b16 %v767
    %v919 = vunpack.c.h.b16 %v767
    %v920 = vunpack.c.l.b16 %v768
    %v921 = vunpack.c.h.b16 %v768
    %v922 = vunpack.c.l.b16 %v769
    %v923 = vunpack.c.l.b16 %v770
    %v924 = vunpack.c.h.b16 %v770
    %v925 = vunpack.c.l.b16 %v771
    %v926 = vunpack.c.h.b16 %v771
    %v927 = vunpack.c.l.b16 %v772
    %v928 = vunpack.c.h.b16 %v772
    %v929 = vunpack.c.l.b16 %v773
    %v930 = vunpack.c.l.b16 %v774
    %v931 = vunpack.c.h.b16 %v774
    %v932 = vunpack.c.l.b16 %v775
    %v933 = vunpack.c.h.b16 %v775
    %v934 = vunpack.c.l.b16 %v776
    %v935 = vunpack.c.h.b16 %v776
    %v936 = vunpack.c.l.b16 %v777
    %v937 = vunpack.c.l.b16 %v778
    %v938 = vunpack.c.h.b16 %v778
    %v939 = vunpack.c.l.b16 %v779
    %v940 = vunpack.c.h.b16 %v779
    %v941 = vunpack.c.l.b16 %v780
    %v942 = vunpack.c.h.b16 %v780
    %v943 = vunpack.c.l.b16 %v781
    %v944 = vunpack.c.l.b16 %v782
    %v945 = vunpack.c.h.b16 %v782
    %v946 = vunpack.c.l.b16 %v783
    %v947 = vunpack.c.h.b16 %v783
    %v948 = vunpack.c.l.b16 %v784
    %v949 = vunpack.c.h.b16 %v784
    %v950 = vunpack.c.l.b16 %v785
    %v951 = vunpack.c.l.b16 %v786
    %v952 = vunpack.c.h.b16 %v786
    %v953 = vunpack.c.l.b16 %v787
    %v954 = vunpack.c.h.b16 %v787
    %v955 = vunpack.c.l.b16 %v788
    %v956 = vunpack.c.h.b16 %v788
    %v957 = vunpack.c.l.b16 %v789
    %v958 = vunpack.c.l.b16 %v790
    %v959 = vunpack.c.h.b16 %v790
    %v960 = vunpack.c.l.b16 %v791
    %v961 = vunpack.c.h.b16 %v791
    %v962 = vunpack.c.l.b16 %v792
    %v963 = vunpack.c.h.b16 %v792
    %v964 = vunpack.c.l.b16 %v793
    %v965 = vunpack.c.l.b16 %v794
    %v966 = vunpack.c.h.b16 %v794
    %v967 = vunpack.c.l.b16 %v795
    %v968 = vunpack.c.h.b16 %v795
    %v969 = vunpack.c.l.b16 %v796
    %v970 = vunpack.c.h.b16 %v796
    %v971 = vunpack.c.l.b16 %v797
    %v972 = vunpack.c.l.b16 %v798
    %v973 = vunpack.c.h.b16 %v798
    %v974 = vunpack.c.l.b16 %v799
    %v975 = vunpack.c.h.b16 %v799
    %v976 = vunpack.c.l.b16 %v800
    %v977 = vunpack.c.h.b16 %v800
    %v978 = vunpack.c.l.b16 %v801
    %v979 = vunpack.c.l.b16 %v802
    %v980 = vunpack.c.h.b16 %v802
    %v981 = vunpack.c.l.b16 %v803
    %v982 = vunpack.c.h.b16 %v803
    %v983 = vunpack.c.l.b16 %v804
    %v984 = vunpack.c.h.b16 %v804
    %v985 = vunpack.c.l.b16 %v805
    %v986 = vunpack.c.l.b16 %v806
    %v987 = vunpack.c.h.b16 %v806
    %v988 = vunpack.c.l.b16 %v807
    %v989 = vunpack.c.h.b16 %v807
    %v990 = vunpack.c.l.b16 %v808
    %v991 = vunpack.c.h.b16 %v808
    %v992 = vunpack.c.l.b16 %v809
    %v993 = vunpack.c.l.b16 %v810
    %v994 = vunpack.c.h.b16 %v810
    %v995 = vunpack.c.l.b16 %v811
    %v996 = vunpack.c.h.b16 %v811
    %v997 = vunpack.c.l.b16 %v812
    %v998 = vunpack.c.h.b16 %v812
    %v999 = vunpack.c.l.b16 %v813
    %v1000 = vunpack.c.l.b16 %v814
    %v1001 = vunpack.c.h.b16 %v814
    %v1002 = vunpack.c.l.b16 %v815
    %v1003 = vunpack.c.h.b16 %v815
    %v1004 = vunpack.c.l.b16 %v816
    %v1005 = vunpack.c.h.b16 %v816
    %v1006 = vunpack.c.l.b16 %v817
    %v1007 = vunpack.c.l.b16 %v818
    %v1008 = vunpack.c.h.b16 %v818
    %v1009 = vunpack.c.l.b16 %v819
    %v1010 = vunpack.c.h.b16 %v819
    %v1011 = vunpack.c.l.b16 %v820
    %v1012 = vunpack.c.h.b16 %v820
    %v1013 = vunpack.c.l.b16 %v821
    %v1014 = vpack.c.b16 %v909, %v902
    %v1015 = vpack.c.b16 %v910, %v903
    %v1016 = vpack.c.b16 %v911, %v904
    %v1017 = vpack.c.b16 %v912, %v905
    %v1018 = vpack.c.b16 %v913, %v906
    %v1019 = vpack.c.b16 %v914, %v907
    %v1020 = vpack.c.b16 %v915, %v908
    %v1021 = vpack.c.b16 %v923, %v916
    %v1022 = vpack.c.b16 %v924, %v917
    %v1023 = vpack.c.b16 %v925, %v918
    %v1024 = vpack.c.b16 %v926, %v919
    %v1025 = vpack.c.b16 %v927, %v920
    %v1026 = vpack.c.b16 %v928, %v921
    %v1027 = vpack.c.b16 %v929, %v922
    %v1028 = vpack.c.b16 %v937, %v930
    %v1029 = vpack.c.b16 %v938, %v931
    %v1030 = vpack.c.b16 %v939, %v932
    %v1031 = vpack.c.b16 %v940, %v933
    %v1032 = vpack.c.b16 %v941, %v934
    %v1033 = vpack.c.b16 %v942, %v935
    %v1034 = vpack.c.b16 %v943, %v936
    %v1035 = vpack.c.b16 %v951, %v944
    %v1036 = vpack.c.b16 %v952, %v945
    %v1037 = vpack.c.b16 %v953, %v946
    %v1038 = vpack.c.b16 %v954, %v947
    %v1039 = vpack.c.b16 %v955, %v948
    %v1040 = vpack.c.b16 %v956, %v949
    %v1041 = vpack.c.b16 %v957, %v950
    %v1042 = vpack.c.b16 %v965, %v958
    %v1043 = vpack.c.b16 %v966, %v959
    %v1044 = vpack.c.b16 %v967, %v960
    %v1045 = vpack.c.b16 %v968, %v961
    %v1046 = vpack.c.b16 %v969, %v962
    %v1047 = vpack.c.b16 %v970, %v963
    %v1048 = vpack.c.b16 %v971, %v964
    %v1049 = vpack.c.b16 %v979, %v972
    %v1050 = vpack.c.b16 %v980, %v973
    %v1051 = vpack.c.b16 %v981, %v974
    %v1052 = vpack.c.b16 %v982, %v975
    %v1053 = vpack.c.b16 %v983, %v976
    %v1054 = vpack.c.b16 %v984, %v977
    %v1055 = vpack.c.b16 %v985, %v978
    %v1056 = vpack.c.b16 %v993, %v986
    %v1057 = vpack.c.b16 %v994, %v987
    %v1058 = vpack.c.b16 %v995, %v988
    %v1059 = vpack.c.b16 %v996, %v989
    %v1060 = vpack.c.b16 %v997, %v990
    %v1061 = vpack.c.b16 %v998, %v991
    %v1062 = vpack.c.b16 %v999, %v992
    %v1063 = vpack.c.b16 %v1007, %v1000
    %v1064 = vpack.c.b16 %v1008, %v1001
    %v1065 = vpack.c.b16 %v1009, %v1002
    %v1066 = vpack.c.b16 %v1010, %v1003
    %v1067 = vpack.c.b16 %v1011, %v1004
    %v1068 = vpack.c.b16 %v1012, %v1005
    %v1069 = vpack.c.b16 %v1013, %v1006
    %1126 = vmatpush.bf16.msra.mxu0 %v1063
    %1127 = vmatpush.bf16.msra.mxu0 %v1056
    %1128 = vmatpush.bf16.msra.mxu0 %v1049
    %1129 = vmatpush.bf16.msra.mxu0 %v1042
    %1130 = vmatpush.bf16.msra.mxu0 %v1035
    %1131 = vmatpush.bf16.msra.mxu0 %v1028
    %1132 = vmatpush.bf16.msra.mxu0 %v1021
    %1133 = vmatpush.bf16.msra.mxu0 %v1014
    %1134 = vmatmul.bf16.gmra.mxu0 %v757
    %v1135 = vpop.f32.mrf.mxu0
    %v1136 = vadd.f32 %v824, %v1135
    %v1137 = vpop.f32.mrf.mxu0
    %1138 = vdwg.mxu0
    %1139 = vmatpush.bf16.msra.mxu0 %v1064
    %1140 = vmatpush.bf16.msra.mxu0 %v1057
    %1141 = vmatpush.bf16.msra.mxu0 %v1050
    %1142 = vmatpush.bf16.msra.mxu0 %v1043
    %1143 = vmatpush.bf16.msra.mxu0 %v1036
    %1144 = vmatpush.bf16.msra.mxu0 %v1029
    %1145 = vmatpush.bf16.msra.mxu0 %v1022
    %1146 = vmatpush.bf16.msra.mxu0 %v1015
    %1147 = vmatmul.bf16.gmra.mxu0 %v757
    %v1148 = vpop.f32.mrf.mxu0
    %v1149 = vadd.f32 %v825, %v1148
    %v1150 = vpop.f32.mrf.mxu0
    %1151 = vdwg.mxu0
    %1152 = vmatpush.bf16.msra.mxu0 %v1065
    %1153 = vmatpush.bf16.msra.mxu0 %v1058
    %1154 = vmatpush.bf16.msra.mxu0 %v1051
    %1155 = vmatpush.bf16.msra.mxu0 %v1044
    %1156 = vmatpush.bf16.msra.mxu0 %v1037
    %1157 = vmatpush.bf16.msra.mxu0 %v1030
    %1158 = vmatpush.bf16.msra.mxu0 %v1023
    %1159 = vmatpush.bf16.msra.mxu0 %v1016
    %1160 = vmatmul.bf16.gmra.mxu0 %v757
    %v1161 = vpop.f32.mrf.mxu0
    %v1162 = vadd.f32 %v826, %v1161
    %v1163 = vpop.f32.mrf.mxu0
    %1164 = vdwg.mxu0
    %1165 = vmatpush.bf16.msra.mxu0 %v1066
    %1166 = vmatpush.bf16.msra.mxu0 %v1059
    %1167 = vmatpush.bf16.msra.mxu0 %v1052
    %1168 = vmatpush.bf16.msra.mxu0 %v1045
    %1169 = vmatpush.bf16.msra.mxu0 %v1038
    %1170 = vmatpush.bf16.msra.mxu0 %v1031
    %1171 = vmatpush.bf16.msra.mxu0 %v1024
    %1172 = vmatpush.bf16.msra.mxu0 %v1017
    %1173 = vmatmul.bf16.gmra.mxu0 %v757
    %v1174 = vpop.f32.mrf.mxu0
    %v1175 = vadd.f32 %v827, %v1174
    %v1176 = vpop.f32.mrf.mxu0
    %1177 = vdwg.mxu0
    %1178 = vmatpush.bf16.msra.mxu0 %v1067
    %1179 = vmatpush.bf16.msra.mxu0 %v1060
    %1180 = vmatpush.bf16.msra.mxu0 %v1053
    %1181 = vmatpush.bf16.msra.mxu0 %v1046
    %1182 = vmatpush.bf16.msra.mxu0 %v1039
    %1183 = vmatpush.bf16.msra.mxu0 %v1032
    %1184 = vmatpush.bf16.msra.mxu0 %v1025
    %1185 = vmatpush.bf16.msra.mxu0 %v1018
    %1186 = vmatmul.bf16.gmra.mxu0 %v757
    %v1187 = vpop.f32.mrf.mxu0
    %v1188 = vadd.f32 %v828, %v1187
    %v1189 = vpop.f32.mrf.mxu0
    %1190 = vdwg.mxu0
    %1191 = vmatpush.bf16.msra.mxu0 %v1068
    %1192 = vmatpush.bf16.msra.mxu0 %v1061
    %1193 = vmatpush.bf16.msra.mxu0 %v1054
    %1194 = vmatpush.bf16.msra.mxu0 %v1047
    %1195 = vmatpush.bf16.msra.mxu0 %v1040
    %1196 = vmatpush.bf16.msra.mxu0 %v1033
    %1197 = vmatpush.bf16.msra.mxu0 %v1026
    %1198 = vmatpush.bf16.msra.mxu0 %v1019
    %1199 = vmatmul.bf16.gmra.mxu0 %v757
    %v1200 = vpop.f32.mrf.mxu0
    %v1201 = vadd.f32 %v829, %v1200
    %v1202 = vpop.f32.mrf.mxu0
    %1203 = vdwg.mxu0
    %1204 = vmatpush.bf16.msra.mxu0 %v1069
    %1205 = vmatpush.bf16.msra.mxu0 %v1062
    %1206 = vmatpush.bf16.msra.mxu0 %v1055
    %1207 = vmatpush.bf16.msra.mxu0 %v1048
    %1208 = vmatpush.bf16.msra.mxu0 %v1041
    %1209 = vmatpush.bf16.msra.mxu0 %v1034
    %1210 = vmatpush.bf16.msra.mxu0 %v1027
    %1211 = vmatpush.bf16.msra.mxu0 %v1020
    %1212 = vmatmul.bf16.gmra.mxu0 %v757
    %v1213 = vpop.f32.mrf.mxu0
    %v1214 = vadd.f32 %v830, %v1213
    %v1215 = vpop.f32.mrf.mxu0
    %1216 = vdwg.mxu0
    %v1217 = vsub.f32 0.0, %v1136
    %v1218 = vsub.f32 0.0, %v1149
    %v1219 = vsub.f32 0.0, %v1162
    %v1220 = vsub.f32 0.0, %v1175
    %v1221 = vsub.f32 0.0, %v1188
    %v1222 = vsub.f32 0.0, %v1201
    %v1223 = vsub.f32 0.0, %v1214
    %v1224 = vmul.f32 %v1217, 1.442695
    %v1225 = vpow.pop %v1224
    %v1226 = vmul.f32 %v1218, 1.442695
    %v1227 = vpow.pop %v1226
    %v1228 = vmul.f32 %v1219, 1.442695
    %v1229 = vpow.pop %v1228
    %v1230 = vmul.f32 %v1220, 1.442695
    %v1231 = vpow.pop %v1230
    %v1232 = vmul.f32 %v1221, 1.442695
    %v1233 = vpow.pop %v1232
    %v1234 = vmul.f32 %v1222, 1.442695
    %v1235 = vpow.pop %v1234
    %v1236 = vmul.f32 %v1223, 1.442695
    %v1237 = vpow.pop %v1236
    %v1238 = vadd.f32 %v1225, 1.0
    %v1239 = vadd.f32 %v1227, 1.0
    %v1240 = vadd.f32 %v1229, 1.0
    %v1241 = vadd.f32 %v1231, 1.0
    %v1242 = vadd.f32 %v1233, 1.0
    %v1243 = vadd.f32 %v1235, 1.0
    %v1244 = vadd.f32 %v1237, 1.0
    %v1245 = vrcp.pop %v1238
    %v1246 = vrcp.pop %v1239
    %v1247 = vrcp.pop %v1240
    %v1248 = vrcp.pop %v1241
    %v1249 = vrcp.pop %v1242
    %v1250 = vrcp.pop %v1243
    %v1251 = vrcp.pop %v1244
    %1252 = vst [vmem:[#allocation11] sm:$0xff] %v1245
    %1253 = vst [vmem:[#allocation11 + $0x8] sm:$0xff] %v1246
    %1254 = vst [vmem:[#allocation11 + $0x10] sm:$0xff] %v1247
    %1255 = vst [vmem:[#allocation11 + $0x18] sm:$0xff] %v1248
    %1256 = vst [vmem:[#allocation11 + $0x20] sm:$0xff] %v1249
    %1257 = vst [vmem:[#allocation11 + $0x28] sm:$0xff] %v1250
    %1258 = vst [vmem:[#allocation11 + $0x30] sm:$0xff] %v1251
    // Predicated region
    $region50: #{tpu_custom_call.1} parent=1 // pred_check
      _
    $region51: #{tpu_custom_call.1} parent=1 // pred_check_branch
      %1260 = sbr.rel (0) target = $region53
    $region52: #{tpu_custom_call.1} parent=1 // pred_region
      %1262 = vsyncadd [#allocation4], 0
      %s1264 = sshll.u32 [#allocation11], 4
      %s1265 = int_to_ptr.vmem [resolvable:$true] %s1264
      %s1266 = sshll.u32 %s7, 4
      %s1267 = int_to_ptr.hbm [resolvable:$true] %s1266
      %1269 = dma.vmem_to_hbm [thread:$0]  %s1265, 896, %s1267, [#allocation4]
    $region53: #{tpu_custom_call.1} parent=1 // pred_fallthru
      _
    // Predicated region
    $region54: #{tpu_custom_call.1} parent=1 // pred_check
      _
    $region55: #{tpu_custom_call.1} parent=1 // pred_check_branch
      %1271 = sbr.rel (0) target = $region57
    $region56: #{tpu_custom_call.1} parent=1 // pred_region
      %1273 = dma.done [#allocation4], 896
    $region57: #{tpu_custom_call.1} parent=1 // pred_fallthru
      _
    %1274 = vsyncpa [#allocation3], 1
    %1275 = vsyncpa [#allocation6], 1
    %1276 = vsyncpa [#allocation9], 1
    %1277 = vsyncpa [#allocation4], 1

</llo_original>
